<compile_context>
chip_gen: v7x
topology: tpu7x:2x2x1
jax: 0.10.0
libtpu: 0.0.40
codegen_flags: <defaults>
</compile_context>

<pallas_src>
import numpy as np

import jax
import jax.numpy as jnp
from jax.experimental import pallas as pl
from jax.experimental.pallas import tpu as pltpu


def _make_shuffle_mask_kernel(runs, n_sems):
    """runs: tuple of (c0, length, is_masked) static channel runs."""
    n_runs = len(runs)

    def kernel(perm_ref, x_hbm, o_hbm, sems):
        # perm_ref: SMEM scalar-prefetch int32[B]
        # x_hbm / o_hbm: raw HBM refs of shape (B, C, H*W)
        # sems: ring of DMA-completion semaphores
        b = pl.program_id(0)
        shuf_row = perm_ref[b]

        def _wait_run(run_idx):
            c0, length, _ = runs[run_idx]
            # Wait descriptor only needs matching shape; indices are irrelevant.
            pltpu.make_async_copy(
                x_hbm.at[0, pl.ds(c0, length)],
                o_hbm.at[0, pl.ds(c0, length)],
                sems.at[run_idx % n_sems],
            ).wait()

        for i, (c0, length, is_masked) in enumerate(runs):
            if i >= n_sems:
                # Lazily retire the DMA that previously used this slot.
                _wait_run(i - n_sems)
            src_row = shuf_row if is_masked else b
            pltpu.make_async_copy(
                x_hbm.at[src_row, pl.ds(c0, length)],
                o_hbm.at[b, pl.ds(c0, length)],
                sems.at[i % n_sems],
            ).start()

        # Retire the tail so no DMA outlives this grid step.
        for i in range(max(0, n_runs - n_sems), n_runs):
            _wait_run(i)

    return kernel


def shuffle_mask(x_nchw, channel_mask, perm, *, max_dma_queue=8):
    """x_nchw: [B, C, H, W]; channel_mask: static bool[C]; perm: int32[B].

    channel_mask must be static (it is a constructor argument of the module);
    it is folded into the kernel as contiguous channel runs.  perm is dynamic
    and must be a valid in-range permutation of range(B) — it drives a
    DMA-level gather and is only bounds-checked by the DMA checker.
    """
    B, C, H, W = x_nchw.shape
    HW = H * W
    itemsize = np.dtype(x_nchw.dtype).itemsize

    # Lane-friendly, fully contiguous per-channel layout (free reshape).
    x3d = x_nchw.reshape(B, C, HW)
    perm = perm.astype(jnp.int32)

    # Static run-length encoding of the channel mask: contiguous channels with
    # the same mask value are moved by a single large DMA.
    mask_np = np.asarray(channel_mask).astype(bool).reshape(C)
    runs = []
    c = 0
    while c < C:
        m = bool(mask_np[c])
        c1 = c + 1
        while c1 < C and bool(mask_np[c1]) == m:
            c1 += 1
        runs.append((c, c1 - c, m))
        c = c1
    runs = tuple(runs)
    n_sems = max(1, min(max_dma_queue, len(runs)))

    kernel = _make_shuffle_mask_kernel(runs, n_sems)

    grid_spec = pltpu.PrefetchScalarGridSpec(
        num_scalar_prefetch=1,
        grid=(B,),
        in_specs=[pl.BlockSpec(memory_space=pl.ANY)],   # x stays in HBM
        out_specs=pl.BlockSpec(memory_space=pl.ANY),    # out written by DMA
        scratch_shapes=[pltpu.SemaphoreType.DMA((n_sems,))],
    )

    out3d = pl.pallas_call(
        kernel,
        out_shape=jax.ShapeDtypeStruct((B, C, HW), x3d.dtype),
        grid_spec=grid_spec,
        compiler_params=pltpu.CompilerParams(
            # Disjoint batch rows per grid step -> safe to split across
            # TensorCores on v7x; no-op on single-TC v5e/v6e.
            dimension_semantics=("parallel",),
        ),
        # Pure copy: advertise it as memory-bound so XLA can overlap neighbors.
        cost_estimate=pl.CostEstimate(
            flops=0,
            transcendentals=0,
            bytes_accessed=2 * B * C * HW * itemsize,
        ),
    )(perm, x3d)

    return out3d.reshape(B, C, H, W)


if __name__ == "__main__":
    key = jax.random.PRNGKey(0)
    k_x, k_perm = jax.random.split(key)

    B, C, H, W = 2, 4, 16, 16
    x = jax.random.normal(k_x, (B, C, H, W), dtype=jnp.float32)

    # TODO(synk): torch.randperm's in-forward RNG has no in-kernel equivalent;
    # the permutation is generated host-side and passed in.
    perm = jax.random.permutation(k_perm, B).astype(jnp.int32)
    channel_mask = jnp.array([True, False, True, False])  # self.mask over channels

    out = shuffle_mask(x, channel_mask, perm)
    out = jax.block_until_ready(out)

    # Reference check in plain JAX.
    ref = jnp.where(channel_mask[None, :, None, None], x[perm], x)
    assert jnp.allclose(out, ref), "mismatch vs reference"

    print("KERNEL_OK")
</pallas_src>

<mosaic_0001>
module attributes {stable_mosaic.version = 11 : i64} {
  func.func @kernel(%arg0: i32, %arg1: memref<2xi32, #tpu.memory_space<smem>>, %arg2: memref<2x4x256xf32, #tpu.memory_space<any>>, %arg3: memref<2x4x256xf32, #tpu.memory_space<any>>, %arg4: memref<4x!tpu.dma_semaphore, #tpu.memory_space<semaphore_mem>>) attributes {dimension_semantics = [#tpu.dimension_semantics<parallel>], iteration_bounds = array<i64: 2>, scalar_prefetch = 1 : i64, scratch_operands = 1 : i64, tpu.core_type = #tpu.core_type<tc>, window_params = [{}, {}]} {
    %0 = arith.index_cast %arg0 : i32 to index
    %1 = memref.load %arg1[%0] : memref<2xi32, #tpu.memory_space<smem>>
    %c0_i32 = arith.constant 0 : i32
    %c0_i32_0 = arith.constant 0 : i32
    %c0_i32_1 = arith.constant 0 : i32
    %2 = tpu.memref_slice %arg2[%1, %c0_i32_0, %c0_i32_1] : memref<2x4x256xf32, #tpu.memory_space<any>> -> memref<1x1x256xf32, #tpu.memory_space<any>>
    %3 = tpu.memref_squeeze %2 : memref<1x1x256xf32, #tpu.memory_space<any>> -> memref<1x256xf32, #tpu.memory_space<any>>
    %c0_i32_2 = arith.constant 0 : i32
    %c0_i32_3 = arith.constant 0 : i32
    %4 = tpu.memref_slice %arg3[%arg0, %c0_i32_2, %c0_i32_3] : memref<2x4x256xf32, #tpu.memory_space<any>> -> memref<1x1x256xf32, #tpu.memory_space<any>>
    %5 = tpu.memref_squeeze %4 : memref<1x1x256xf32, #tpu.memory_space<any>> -> memref<1x256xf32, #tpu.memory_space<any>>
    %6 = tpu.memref_slice %arg4[%c0_i32] : memref<4x!tpu.dma_semaphore, #tpu.memory_space<semaphore_mem>> -> memref<1x!tpu.dma_semaphore, #tpu.memory_space<semaphore_mem>>
    %7 = tpu.memref_squeeze %6 : memref<1x!tpu.dma_semaphore, #tpu.memory_space<semaphore_mem>> -> memref<!tpu.dma_semaphore, #tpu.memory_space<semaphore_mem>>
    tpu.enqueue_dma source(%3 : memref<1x256xf32, #tpu.memory_space<any>>) target(%5 : memref<1x256xf32, #tpu.memory_space<any>>) target_semaphore(%7 : memref<!tpu.dma_semaphore, #tpu.memory_space<semaphore_mem>>)
    %c1_i32 = arith.constant 1 : i32
    %c1_i32_4 = arith.constant 1 : i32
    %c0_i32_5 = arith.constant 0 : i32
    %8 = tpu.memref_slice %arg2[%arg0, %c1_i32_4, %c0_i32_5] : memref<2x4x256xf32, #tpu.memory_space<any>> -> memref<1x1x256xf32, #tpu.memory_space<any>>
    %9 = tpu.memref_squeeze %8 : memref<1x1x256xf32, #tpu.memory_space<any>> -> memref<1x256xf32, #tpu.memory_space<any>>
    %c1_i32_6 = arith.constant 1 : i32
    %c0_i32_7 = arith.constant 0 : i32
    %10 = tpu.memref_slice %arg3[%arg0, %c1_i32_6, %c0_i32_7] : memref<2x4x256xf32, #tpu.memory_space<any>> -> memref<1x1x256xf32, #tpu.memory_space<any>>
    %11 = tpu.memref_squeeze %10 : memref<1x1x256xf32, #tpu.memory_space<any>> -> memref<1x256xf32, #tpu.memory_space<any>>
    %12 = tpu.memref_slice %arg4[%c1_i32] : memref<4x!tpu.dma_semaphore, #tpu.memory_space<semaphore_mem>> -> memref<1x!tpu.dma_semaphore, #tpu.memory_space<semaphore_mem>>
    %13 = tpu.memref_squeeze %12 : memref<1x!tpu.dma_semaphore, #tpu.memory_space<semaphore_mem>> -> memref<!tpu.dma_semaphore, #tpu.memory_space<semaphore_mem>>
    tpu.enqueue_dma source(%9 : memref<1x256xf32, #tpu.memory_space<any>>) target(%11 : memref<1x256xf32, #tpu.memory_space<any>>) target_semaphore(%13 : memref<!tpu.dma_semaphore, #tpu.memory_space<semaphore_mem>>)
    %c2_i32 = arith.constant 2 : i32
    %c2_i32_8 = arith.constant 2 : i32
    %c0_i32_9 = arith.constant 0 : i32
    %14 = tpu.memref_slice %arg2[%1, %c2_i32_8, %c0_i32_9] : memref<2x4x256xf32, #tpu.memory_space<any>> -> memref<1x1x256xf32, #tpu.memory_space<any>>
    %15 = tpu.memref_squeeze %14 : memref<1x1x256xf32, #tpu.memory_space<any>> -> memref<1x256xf32, #tpu.memory_space<any>>
    %c2_i32_10 = arith.constant 2 : i32
    %c0_i32_11 = arith.constant 0 : i32
    %16 = tpu.memref_slice %arg3[%arg0, %c2_i32_10, %c0_i32_11] : memref<2x4x256xf32, #tpu.memory_space<any>> -> memref<1x1x256xf32, #tpu.memory_space<any>>
    %17 = tpu.memref_squeeze %16 : memref<1x1x256xf32, #tpu.memory_space<any>> -> memref<1x256xf32, #tpu.memory_space<any>>
    %18 = tpu.memref_slice %arg4[%c2_i32] : memref<4x!tpu.dma_semaphore, #tpu.memory_space<semaphore_mem>> -> memref<1x!tpu.dma_semaphore, #tpu.memory_space<semaphore_mem>>
    %19 = tpu.memref_squeeze %18 : memref<1x!tpu.dma_semaphore, #tpu.memory_space<semaphore_mem>> -> memref<!tpu.dma_semaphore, #tpu.memory_space<semaphore_mem>>
    tpu.enqueue_dma source(%15 : memref<1x256xf32, #tpu.memory_space<any>>) target(%17 : memref<1x256xf32, #tpu.memory_space<any>>) target_semaphore(%19 : memref<!tpu.dma_semaphore, #tpu.memory_space<semaphore_mem>>)
    %c3_i32 = arith.constant 3 : i32
    %c3_i32_12 = arith.constant 3 : i32
    %c0_i32_13 = arith.constant 0 : i32
    %20 = tpu.memref_slice %arg2[%arg0, %c3_i32_12, %c0_i32_13] : memref<2x4x256xf32, #tpu.memory_space<any>> -> memref<1x1x256xf32, #tpu.memory_space<any>>
    %21 = tpu.memref_squeeze %20 : memref<1x1x256xf32, #tpu.memory_space<any>> -> memref<1x256xf32, #tpu.memory_space<any>>
    %c3_i32_14 = arith.constant 3 : i32
    %c0_i32_15 = arith.constant 0 : i32
    %22 = tpu.memref_slice %arg3[%arg0, %c3_i32_14, %c0_i32_15] : memref<2x4x256xf32, #tpu.memory_space<any>> -> memref<1x1x256xf32, #tpu.memory_space<any>>
    %23 = tpu.memref_squeeze %22 : memref<1x1x256xf32, #tpu.memory_space<any>> -> memref<1x256xf32, #tpu.memory_space<any>>
    %24 = tpu.memref_slice %arg4[%c3_i32] : memref<4x!tpu.dma_semaphore, #tpu.memory_space<semaphore_mem>> -> memref<1x!tpu.dma_semaphore, #tpu.memory_space<semaphore_mem>>
    %25 = tpu.memref_squeeze %24 : memref<1x!tpu.dma_semaphore, #tpu.memory_space<semaphore_mem>> -> memref<!tpu.dma_semaphore, #tpu.memory_space<semaphore_mem>>
    tpu.enqueue_dma source(%21 : memref<1x256xf32, #tpu.memory_space<any>>) target(%23 : memref<1x256xf32, #tpu.memory_space<any>>) target_semaphore(%25 : memref<!tpu.dma_semaphore, #tpu.memory_space<semaphore_mem>>)
    %c0_i32_16 = arith.constant 0 : i32
    %c0_i32_17 = arith.constant 0 : i32
    %c0_i32_18 = arith.constant 0 : i32
    %c0_i32_19 = arith.constant 0 : i32
    %c0_i32_20 = arith.constant 0 : i32
    %26 = tpu.memref_slice %arg2[%c0_i32_16, %c0_i32_19, %c0_i32_20] : memref<2x4x256xf32, #tpu.memory_space<any>> -> memref<1x1x256xf32, #tpu.memory_space<any>>
    %27 = tpu.memref_squeeze %26 : memref<1x1x256xf32, #tpu.memory_space<any>> -> memref<1x256xf32, #tpu.memory_space<any>>
    %c0_i32_21 = arith.constant 0 : i32
    %c0_i32_22 = arith.constant 0 : i32
    %28 = tpu.memref_slice %arg3[%c0_i32_17, %c0_i32_21, %c0_i32_22] : memref<2x4x256xf32, #tpu.memory_space<any>> -> memref<1x1x256xf32, #tpu.memory_space<any>>
    %29 = tpu.memref_squeeze %28 : memref<1x1x256xf32, #tpu.memory_space<any>> -> memref<1x256xf32, #tpu.memory_space<any>>
    %30 = tpu.memref_slice %arg4[%c0_i32_18] : memref<4x!tpu.dma_semaphore, #tpu.memory_space<semaphore_mem>> -> memref<1x!tpu.dma_semaphore, #tpu.memory_space<semaphore_mem>>
    %31 = tpu.memref_squeeze %30 : memref<1x!tpu.dma_semaphore, #tpu.memory_space<semaphore_mem>> -> memref<!tpu.dma_semaphore, #tpu.memory_space<semaphore_mem>>
    tpu.wait_dma2 semaphore(%31 : memref<!tpu.dma_semaphore, #tpu.memory_space<semaphore_mem>>) src(%27 : memref<1x256xf32, #tpu.memory_space<any>>) dst(%29 : memref<1x256xf32, #tpu.memory_space<any>>)
    %c0_i32_23 = arith.constant 0 : i32
    %c0_i32_24 = arith.constant 0 : i32
    %c1_i32_25 = arith.constant 1 : i32
    %c1_i32_26 = arith.constant 1 : i32
    %c0_i32_27 = arith.constant 0 : i32
    %32 = tpu.memref_slice %arg2[%c0_i32_23, %c1_i32_26, %c0_i32_27] : memref<2x4x256xf32, #tpu.memory_space<any>> -> memref<1x1x256xf32, #tpu.memory_space<any>>
    %33 = tpu.memref_squeeze %32 : memref<1x1x256xf32, #tpu.memory_space<any>> -> memref<1x256xf32, #tpu.memory_space<any>>
    %c1_i32_28 = arith.constant 1 : i32
    %c0_i32_29 = arith.constant 0 : i32
    %34 = tpu.memref_slice %arg3[%c0_i32_24, %c1_i32_28, %c0_i32_29] : memref<2x4x256xf32, #tpu.memory_space<any>> -> memref<1x1x256xf32, #tpu.memory_space<any>>
    %35 = tpu.memref_squeeze %34 : memref<1x1x256xf32, #tpu.memory_space<any>> -> memref<1x256xf32, #tpu.memory_space<any>>
    %36 = tpu.memref_slice %arg4[%c1_i32_25] : memref<4x!tpu.dma_semaphore, #tpu.memory_space<semaphore_mem>> -> memref<1x!tpu.dma_semaphore, #tpu.memory_space<semaphore_mem>>
    %37 = tpu.memref_squeeze %36 : memref<1x!tpu.dma_semaphore, #tpu.memory_space<semaphore_mem>> -> memref<!tpu.dma_semaphore, #tpu.memory_space<semaphore_mem>>
    tpu.wait_dma2 semaphore(%37 : memref<!tpu.dma_semaphore, #tpu.memory_space<semaphore_mem>>) src(%33 : memref<1x256xf32, #tpu.memory_space<any>>) dst(%35 : memref<1x256xf32, #tpu.memory_space<any>>)
    %c0_i32_30 = arith.constant 0 : i32
    %c0_i32_31 = arith.constant 0 : i32
    %c2_i32_32 = arith.constant 2 : i32
    %c2_i32_33 = arith.constant 2 : i32
    %c0_i32_34 = arith.constant 0 : i32
    %38 = tpu.memref_slice %arg2[%c0_i32_30, %c2_i32_33, %c0_i32_34] : memref<2x4x256xf32, #tpu.memory_space<any>> -> memref<1x1x256xf32, #tpu.memory_space<any>>
    %39 = tpu.memref_squeeze %38 : memref<1x1x256xf32, #tpu.memory_space<any>> -> memref<1x256xf32, #tpu.memory_space<any>>
    %c2_i32_35 = arith.constant 2 : i32
    %c0_i32_36 = arith.constant 0 : i32
    %40 = tpu.memref_slice %arg3[%c0_i32_31, %c2_i32_35, %c0_i32_36] : memref<2x4x256xf32, #tpu.memory_space<any>> -> memref<1x1x256xf32, #tpu.memory_space<any>>
    %41 = tpu.memref_squeeze %40 : memref<1x1x256xf32, #tpu.memory_space<any>> -> memref<1x256xf32, #tpu.memory_space<any>>
    %42 = tpu.memref_slice %arg4[%c2_i32_32] : memref<4x!tpu.dma_semaphore, #tpu.memory_space<semaphore_mem>> -> memref<1x!tpu.dma_semaphore, #tpu.memory_space<semaphore_mem>>
    %43 = tpu.memref_squeeze %42 : memref<1x!tpu.dma_semaphore, #tpu.memory_space<semaphore_mem>> -> memref<!tpu.dma_semaphore, #tpu.memory_space<semaphore_mem>>
    tpu.wait_dma2 semaphore(%43 : memref<!tpu.dma_semaphore, #tpu.memory_space<semaphore_mem>>) src(%39 : memref<1x256xf32, #tpu.memory_space<any>>) dst(%41 : memref<1x256xf32, #tpu.memory_space<any>>)
    %c0_i32_37 = arith.constant 0 : i32
    %c0_i32_38 = arith.constant 0 : i32
    %c3_i32_39 = arith.constant 3 : i32
    %c3_i32_40 = arith.constant 3 : i32
    %c0_i32_41 = arith.constant 0 : i32
    %44 = tpu.memref_slice %arg2[%c0_i32_37, %c3_i32_40, %c0_i32_41] : memref<2x4x256xf32, #tpu.memory_space<any>> -> memref<1x1x256xf32, #tpu.memory_space<any>>
    %45 = tpu.memref_squeeze %44 : memref<1x1x256xf32, #tpu.memory_space<any>> -> memref<1x256xf32, #tpu.memory_space<any>>
    %c3_i32_42 = arith.constant 3 : i32
    %c0_i32_43 = arith.constant 0 : i32
    %46 = tpu.memref_slice %arg3[%c0_i32_38, %c3_i32_42, %c0_i32_43] : memref<2x4x256xf32, #tpu.memory_space<any>> -> memref<1x1x256xf32, #tpu.memory_space<any>>
    %47 = tpu.memref_squeeze %46 : memref<1x1x256xf32, #tpu.memory_space<any>> -> memref<1x256xf32, #tpu.memory_space<any>>
    %48 = tpu.memref_slice %arg4[%c3_i32_39] : memref<4x!tpu.dma_semaphore, #tpu.memory_space<semaphore_mem>> -> memref<1x!tpu.dma_semaphore, #tpu.memory_space<semaphore_mem>>
    %49 = tpu.memref_squeeze %48 : memref<1x!tpu.dma_semaphore, #tpu.memory_space<semaphore_mem>> -> memref<!tpu.dma_semaphore, #tpu.memory_space<semaphore_mem>>
    tpu.wait_dma2 semaphore(%49 : memref<!tpu.dma_semaphore, #tpu.memory_space<semaphore_mem>>) src(%45 : memref<1x256xf32, #tpu.memory_space<any>>) dst(%47 : memref<1x256xf32, #tpu.memory_space<any>>)
    return
  }
}

</mosaic_0001>

<llo_original>
// kernel: tpu_custom_call.1
$region0: #{tpu_custom_call.1}
  #allocation0 [shape = 'u32[]', space=smem, size = 0x4, offset = 0x4, fixed_abs, tag = 'smem constant byte address 0x4 - core index']
  #allocation1 [shape = 'u32[144,128]{1,0:T(1,128)}', space=vmem, size = 0x12000, scoped, tag = 'internal scratch']
  #allocation2 [shape = 's32[4]{0}', space=sflag, size = 0x10, scoped, tag = 'scratch operand']
  #allocation3 [shape = 's32[1]{0}', space=sflag, size = 0x4, scoped, tag = 'scoped memory for tpu_custom_call.1']
  #allocation4 [shape = 'u8[512]{0}', space=smem, size = 0x200, scoped, tag = 'prefetched SMEM operand 0']
  #allocation5 [shape = 's32[]', space=sflag, size = 0x4, offset = 0, fixed_abs, tag = 'sflag constant byte address 0x0 - dummy sync flag']
  #allocation7 [shape = 's32[]', space=sflag, size = 0x4, offset = 0, fixed_abs, tag = 'sflag constant byte address 0x0 - dummy sync flag']
  #allocation9 [shape = 's32[]', space=sflag, size = 0x4, offset = 0, fixed_abs, tag = 'sflag constant byte address 0x0 - dummy sync flag']
  #allocation11 [shape = 's32[]', space=sflag, size = 0x4, offset = 0, fixed_abs, tag = 'sflag constant byte address 0x0 - dummy sync flag']
  %s0 = inlined_call_operand.hbm [shape: s32[2], index: 0, kind: input, shape index: {}]
  %s1 = inlined_call_operand.hbm [shape: f32[2,4,256], index: 1, kind: input, shape index: {}]
  %s2 = inlined_call_operand.hbm [shape: f32[2,4,256], index: 2, kind: output, shape index: {}]
  %s3 = sld [smem:[#allocation0]]
  $region9: #{tpu_custom_call.1} parent=0
    _
  %s5 = ssub.s32 1, %s3
  %s6 = scalar_select 0, %s5, %s3
  %8 = dma.hbm_to_smem %s0, 16, [#allocation4], [#allocation3]
  %9 = dma.done [#allocation3], 16
  %10 = sfence
  loop: start=0, step=1, limit=2
  $region2: #{tpu_custom_call.1} parent=0 // loop_pre_header
    _
  $region3: #{tpu_custom_call.1} parent=0 // loop_header
    %s12 = sphi 0, %s16
    %p13 = scmp.ge.s32.totalorder %s12, 2
  $region4: #{tpu_custom_call.1} parent=0 // loop_header_branch
    %15 = sbr.rel (%p13) target = $region8
  $region5: #{tpu_custom_call.1} parent=0 // loop_body
    #allocation6 [shape = 'u32[3]{0}', space=smem, size = 0xc, scoped, tag = 'DMA stride descriptor']
    #allocation8 [shape = 'u32[3]{0}', space=smem, size = 0xc, scoped, tag = 'DMA stride descriptor']
    #allocation10 [shape = 'u32[3]{0}', space=smem, size = 0xc, scoped, tag = 'DMA stride descriptor']
    #allocation12 [shape = 'u32[3]{0}', space=smem, size = 0xc, scoped, tag = 'DMA stride descriptor']
    %s17 = sadd.s32 %s12, 1
    %s18 = sld [smem:[#allocation4 + %s12]]
    %s19 = smul.u32 %s18, 8
    %s20 = smul.addr %s19, 16
    %s21 = scalar_lea.hbm %s1, %s20
    %s22 = smul.u32 %s12, 8
    %s23 = smul.addr %s22, 16
    %s24 = scalar_lea.hbm %s2, %s23
    %s26 = sshll.u32 1, 14
    %s27 = sxor.u32 4294967295, %s26
    %s30 = sshll.u32 3, 24
    %s31 = sxor.u32 4294967295, %s30
    %s32 = sand.u32 0, %s31
    %s34 = sor.u32 %s32, 0
    %37 = sst [smem:[#allocation6]] 64
    %s38 = scalar_lea.smem [#allocation6], 1
    %39 = sst [smem:[%s38]] 64
    %s40 = scalar_lea.smem [#allocation6], 2
    %41 = sst [smem:[%s40]] 1
    %43 = dma.general %s21, 32, %s24, [#allocation2], [#allocation5], [#allocation6], %s34, 0
    %s44 = sadd.s32 1, %s22
    %s45 = smul.addr %s44, 16
    %s46 = scalar_lea.hbm %s1, %s45
    %s47 = smul.addr %s44, 16
    %s48 = scalar_lea.hbm %s2, %s47
    %s49 = scalar_lea.sflag [#allocation2], 1
    %s51 = sshll.u32 1, 14
    %s52 = sxor.u32 4294967295, %s51
    %s55 = sshll.u32 3, 24
    %s56 = sxor.u32 4294967295, %s55
    %s57 = sand.u32 0, %s56
    %s59 = sor.u32 %s57, 0
    %62 = sst [smem:[#allocation8]] 64
    %s63 = scalar_lea.smem [#allocation8], 1
    %64 = sst [smem:[%s63]] 64
    %s65 = scalar_lea.smem [#allocation8], 2
    %66 = sst [smem:[%s65]] 1
    %68 = dma.general %s46, 32, %s48, %s49, [#allocation7], [#allocation8], %s59, 0
    %s69 = sadd.s32 2, %s19
    %s70 = smul.addr %s69, 16
    %s71 = scalar_lea.hbm %s1, %s70
    %s72 = sadd.s32 2, %s22
    %s73 = smul.addr %s72, 16
    %s74 = scalar_lea.hbm %s2, %s73
    %s75 = scalar_lea.sflag [#allocation2], 2
    %s77 = sshll.u32 1, 14
    %s78 = sxor.u32 4294967295, %s77
    %s81 = sshll.u32 3, 24
    %s82 = sxor.u32 4294967295, %s81
    %s83 = sand.u32 0, %s82
    %s85 = sor.u32 %s83, 0
    %88 = sst [smem:[#allocation10]] 64
    %s89 = scalar_lea.smem [#allocation10], 1
    %90 = sst [smem:[%s89]] 64
    %s91 = scalar_lea.smem [#allocation10], 2
    %92 = sst [smem:[%s91]] 1
    %94 = dma.general %s71, 32, %s74, %s75, [#allocation9], [#allocation10], %s85, 0
    %s95 = sadd.s32 3, %s22
    %s96 = smul.addr %s95, 16
    %s97 = scalar_lea.hbm %s1, %s96
    %s98 = smul.addr %s95, 16
    %s99 = scalar_lea.hbm %s2, %s98
    %s100 = scalar_lea.sflag [#allocation2], 3
    %s102 = sshll.u32 1, 14
    %s103 = sxor.u32 4294967295, %s102
    %s106 = sshll.u32 3, 24
    %s107 = sxor.u32 4294967295, %s106
    %s108 = sand.u32 0, %s107
    %s110 = sor.u32 %s108, 0
    %113 = sst [smem:[#allocation12]] 64
    %s114 = scalar_lea.smem [#allocation12], 1
    %115 = sst [smem:[%s114]] 64
    %s116 = scalar_lea.smem [#allocation12], 2
    %117 = sst [smem:[%s116]] 1
    %119 = dma.general %s97, 32, %s99, %s100, [#allocation11], [#allocation12], %s110, 0
    %s120 = smul.u32 1, 2
    %s121 = sshll.u32 %s120, 4
    %122 = dma.done [#allocation2], %s121
    %s123 = sshll.u32 %s120, 4
    %124 = dma.done %s49, %s123
    %s125 = sshll.u32 %s120, 4
    %126 = dma.done %s75, %s125
    %s127 = sshll.u32 %s120, 4
    %128 = dma.done %s100, %s127
  $region6: #{tpu_custom_call.1} parent=0 // loop_footer
    %s16 = sadd.s32 1, %s12
  $region7: #{tpu_custom_call.1} parent=0 // loop_footer_branch
    %11 = sbr.rel target = $region3
  $region8: #{tpu_custom_call.1} parent=0 // loop_exit
    _
  %129 = vsyncmov [#allocation2]
  %s130 = vpop.sfrf %129
  %p131 = scmp.eq.s32.totalorder %s130, 0
  %p132 = pneg %p131
  %134 = shalt.err (%p132)
  %s135 = scalar_lea.sflag [#allocation2], 1
  %136 = vsyncmov %s135
  %s137 = vpop.sfrf %136
  %p138 = scmp.eq.s32.totalorder %s137, 0
  %p139 = pneg %p138
  %141 = shalt.err (%p139)
  %s142 = scalar_lea.sflag [#allocation2], 2
  %143 = vsyncmov %s142
  %s144 = vpop.sfrf %143
  %p145 = scmp.eq.s32.totalorder %s144, 0
  %p146 = pneg %p145
  %148 = shalt.err (%p146)
  %s149 = scalar_lea.sflag [#allocation2], 3
  %150 = vsyncmov %s149
  %s151 = vpop.sfrf %150
  %p152 = scmp.eq.s32.totalorder %s151, 0
  %p153 = pneg %p152
  %155 = shalt.err (%p153)

</llo_original>
